<compile_context>
chip_gen: v5e
topology: v5e:2x2
jax: 0.10.0
libtpu: 0.0.40
codegen_flags: <defaults>
</compile_context>

<pallas_src>
import functools

import jax
import jax.numpy as jnp
from jax.experimental import pallas as pl
from jax.experimental.pallas import tpu as pltpu


# ----------------------------------------------------------------------------
# Fused kernel: node GCN stack + head projection (once) + per-edge-tile gather head.
# Grid: (num_edge_tiles,), dimension_semantics=("arbitrary",).
# ----------------------------------------------------------------------------
def fused_edge_classifier_kernel(at_ref, xt_ref, w1t_ref, b1_ref, w2t_ref, b2_ref,
                                 wheadt_ref, src_ref, dst_ref, attr_ref, wattr_ref,
                                 blin_ref, out_ref, ylogits_sc):
    f32 = jnp.float32

    # --- Node pass (runs once; scratch persists across edge tiles because the grid axis
    #     is "arbitrary", i.e. sequential on one TensorCore). ---------------------------
    @pl.when(pl.program_id(0) == 0)
    def _():
        a_t = at_ref[...]                                                    # [N, N] = A_hat^T
        # GCN layer 1 (transposed, reordered):  h1^T = relu(W1^T (X^T A^T) + b1^T)
        xa = jnp.dot(xt_ref[...], a_t, preferred_element_type=f32)           # [F, N]
        h1 = jnp.maximum(
            jnp.dot(w1t_ref[...], xa, preferred_element_type=f32) + b1_ref[...], 0.0)  # [H1, N]
        # GCN layer 2 (transposed):  h2^T = relu((W2^T h1^T) A^T + b2^T)
        h1w = jnp.dot(w2t_ref[...], h1, preferred_element_type=f32)          # [H2, N]
        h2 = jnp.maximum(
            jnp.dot(h1w, a_t, preferred_element_type=f32) + b2_ref[...], 0.0)          # [H2, N]
        # Head projection at node level, lane-dense: rows 0:2 = src half, rows 2:4 = dst half.
        ylogits_sc[...] = jnp.dot(wheadt_ref[...], h2, preferred_element_type=f32)     # [4, N]

    # --- Per-edge-tile gather head (every grid step). ---------------------------------
    n = at_ref.shape[0]
    te = src_ref.shape[1]

    # Gather as compare + tiny matmul; masks live only in vregs, never in HBM.
    node_ids = jax.lax.broadcasted_iota(jnp.int32, (n, te), 0)               # [N, TE]
    sel_src = (node_ids == src_ref[...]).astype(f32)                         # [N, TE]
    sel_dst = (node_ids == dst_ref[...]).astype(f32)                         # [N, TE]

    y = ylogits_sc[...]                                                      # [4, N]
    out_ref[...] = (jnp.dot(y[0:2, :], sel_src, preferred_element_type=f32)  # src logits [2, TE]
                    + jnp.dot(y[2:4, :], sel_dst, preferred_element_type=f32)  # dst logits [2, TE]
                    + jnp.dot(wattr_ref[...], attr_ref[...], preferred_element_type=f32)  # attr
                    + blin_ref[...])                                         # bias [2, 1]


def build_gcn_norm_adjacency(edge_index, num_nodes):
    """Dense A_hat = D^-1/2 (A + I) D^-1/2, messages flow src -> dst (PyG gcn_norm semantics)."""
    src, dst = edge_index[0], edge_index[1]
    A = jnp.zeros((num_nodes, num_nodes), jnp.float32).at[dst, src].add(1.0)
    A = A + jnp.eye(num_nodes, dtype=jnp.float32)           # add self loops
    deg = jnp.sum(A, axis=1)                                 # in-degree incl. self loop
    dinv = jax.lax.rsqrt(deg)
    return A * dinv[:, None] * dinv[None, :]


@functools.partial(jax.jit, static_argnames=("edge_tile",))
def edge_classifier_forward(x, edge_index, edge_attr, W1, b1, W2, b2, Wlin, blin,
                            edge_tile=256):
    f32 = jnp.float32
    N, F_IN = x.shape
    E = edge_index.shape[1]
    H1 = W1.shape[1]
    H2 = W2.shape[1]
    A_DIM = edge_attr.shape[1]

    # A_hat^T so the whole node pass can run nodes-on-lanes (transposed) with no in-kernel
    # transposes; one-time small XLA transposes of weights/inputs below are layout plumbing.
    a_hat_t = build_gcn_norm_adjacency(edge_index, N).T.astype(f32)          # [N, N]

    # Split Linear weight [2*H2 + A_DIM, 2] along the concat axis and fold the src/dst halves
    # into a single node-level head projection W_head^T of shape [4, H2].
    w_src = Wlin[:H2]
    w_attr = Wlin[H2:H2 + A_DIM]
    w_dst = Wlin[H2 + A_DIM:]
    w_head_t = jnp.concatenate([w_src, w_dst], axis=1).T.astype(f32)         # [4, H2]

    # Lane-dense edge layout, padded to a multiple of edge_tile (padded edges point at node 0
    # with zero attrs and are sliced away at the end).
    e_pad = -(-E // edge_tile) * edge_tile
    src_idx = jnp.zeros((1, e_pad), jnp.int32).at[0, :E].set(edge_index[0].astype(jnp.int32))
    dst_idx = jnp.zeros((1, e_pad), jnp.int32).at[0, :E].set(edge_index[1].astype(jnp.int32))
    attr_t = jnp.zeros((A_DIM, e_pad), f32).at[:, :E].set(edge_attr.T.astype(f32))

    grid = (e_pad // edge_tile,)
    out_t = pl.pallas_call(
        fused_edge_classifier_kernel,
        out_shape=jax.ShapeDtypeStruct((2, e_pad), f32),
        grid=grid,
        in_specs=[
            pl.BlockSpec((N, N), lambda t: (0, 0)),                # A_hat^T       (resident)
            pl.BlockSpec((F_IN, N), lambda t: (0, 0)),             # X^T           (resident)
            pl.BlockSpec((H1, F_IN), lambda t: (0, 0)),            # W1^T          (resident)
            pl.BlockSpec((H1, 1), lambda t: (0, 0)),               # b1 column     (resident)
            pl.BlockSpec((H2, H1), lambda t: (0, 0)),              # W2^T          (resident)
            pl.BlockSpec((H2, 1), lambda t: (0, 0)),               # b2 column     (resident)
            pl.BlockSpec((4, H2), lambda t: (0, 0)),               # W_head^T      (resident)
            pl.BlockSpec((1, edge_tile), lambda t: (0, t)),        # src indices tile
            pl.BlockSpec((1, edge_tile), lambda t: (0, t)),        # dst indices tile
            pl.BlockSpec((A_DIM, edge_tile), lambda t: (0, t)),    # edge_attr^T tile
            pl.BlockSpec((2, A_DIM), lambda t: (0, 0)),            # w_attr^T      (resident)
            pl.BlockSpec((2, 1), lambda t: (0, 0)),                # Linear bias   (resident)
        ],
        out_specs=pl.BlockSpec((2, edge_tile), lambda t: (0, t)),  # lane-dense output tile
        scratch_shapes=[pltpu.VMEM((4, N), f32)],                  # node logits, persists
        compiler_params=pltpu.CompilerParams(dimension_semantics=("arbitrary",)),
    )(a_hat_t, x.T.astype(f32), W1.T.astype(f32), b1.reshape(-1, 1).astype(f32),
      W2.T.astype(f32), b2.reshape(-1, 1).astype(f32), w_head_t,
      src_idx, dst_idx, attr_t, w_attr.T.astype(f32), blin.reshape(2, 1).astype(f32))

    return out_t[:, :E].T                                          # [E, 2]


def reference_forward(x, edge_index, edge_attr, W1, b1, W2, b2, Wlin, blin):
    a_hat = build_gcn_norm_adjacency(edge_index, x.shape[0])
    h1 = jax.nn.relu(a_hat @ (x @ W1) + b1)
    h2 = jax.nn.relu(a_hat @ (h1 @ W2) + b2)
    x_src = h2[edge_index[0]]
    x_dst = h2[edge_index[1]]
    feat = jnp.concatenate([x_src, edge_attr, x_dst], axis=-1)
    return feat @ Wlin + blin


def glorot_uniform(key, shape):
    fan_in, fan_out = shape
    s = jnp.sqrt(6.0 / (fan_in + fan_out))
    return jax.random.uniform(key, shape, jnp.float32, -s, s)


if __name__ == "__main__":
    # Small, deterministic problem: 8 nodes, 16-dim node features,
    # hidden1=32, hidden2=32, 4-dim edge attributes, 16 directed edges (ring both ways).
    N, F_IN, H1, H2, A_DIM = 8, 16, 32, 32, 4

    key = jax.random.PRNGKey(0)
    k_x, k_attr, k_w1, k_w2, k_wl, k_bl = jax.random.split(key, 6)

    x = jax.random.normal(k_x, (N, F_IN), jnp.float32)

    fwd = jnp.arange(N, dtype=jnp.int32)
    edge_index = jnp.stack([
        jnp.concatenate([fwd, (fwd + 1) % N]),
        jnp.concatenate([(fwd + 1) % N, fwd]),
    ])                                                  # [2, E], E = 16
    E = edge_index.shape[1]
    edge_attr = jax.random.normal(k_attr, (E, A_DIM), jnp.float32)

    # Deterministic parameter init (GCNConv: glorot weight, zero bias; Linear: uniform).
    W1 = glorot_uniform(k_w1, (F_IN, H1))
    b1 = jnp.zeros((H1,), jnp.float32)
    W2 = glorot_uniform(k_w2, (H1, H2))
    b2 = jnp.zeros((H2,), jnp.float32)
    lin_in = 2 * H2 + A_DIM
    bound = 1.0 / jnp.sqrt(jnp.float32(lin_in))
    Wlin = jax.random.uniform(k_wl, (lin_in, 2), jnp.float32, -bound, bound)
    blin = jax.random.uniform(k_bl, (2,), jnp.float32, -bound, bound)

    out = edge_classifier_forward(x, edge_index, edge_attr, W1, b1, W2, b2, Wlin, blin)
    out = jax.block_until_ready(out)

    ref = reference_forward(x, edge_index, edge_attr, W1, b1, W2, b2, Wlin, blin)
    assert out.shape == (E, 2)
    # All-f32 matmuls with f32 accumulation; only difference vs. ref is summation order.
    assert jnp.allclose(out, ref, atol=1e-3, rtol=1e-3), float(jnp.max(jnp.abs(out - ref)))

    print("KERNEL_OK")
</pallas_src>

<mosaic_0001>
module attributes {stable_mosaic.version = 11 : i64} {
  func.func @fused_edge_classifier_kernel(%arg0: i32, %arg1: memref<8x8xf32, #tpu.memory_space<vmem>>, %arg2: memref<16x8xf32, #tpu.memory_space<vmem>>, %arg3: memref<32x16xf32, #tpu.memory_space<vmem>>, %arg4: memref<32x1xf32, #tpu.memory_space<vmem>>, %arg5: memref<32x32xf32, #tpu.memory_space<vmem>>, %arg6: memref<32x1xf32, #tpu.memory_space<vmem>>, %arg7: memref<4x32xf32, #tpu.memory_space<vmem>>, %arg8: memref<1x256xi32, #tpu.memory_space<vmem>>, %arg9: memref<1x256xi32, #tpu.memory_space<vmem>>, %arg10: memref<4x256xf32, #tpu.memory_space<vmem>>, %arg11: memref<2x4xf32, #tpu.memory_space<vmem>>, %arg12: memref<2x1xf32, #tpu.memory_space<vmem>>, %arg13: memref<2x256xf32, #tpu.memory_space<vmem>>, %arg14: memref<4x8xf32, #tpu.memory_space<vmem>>) attributes {dimension_semantics = [#tpu.dimension_semantics<arbitrary>], iteration_bounds = array<i64: 1>, scalar_prefetch = 0 : i64, scratch_operands = 1 : i64, tpu.core_type = #tpu.core_type<tc>, window_params = [{pipeline_mode = #tpu.pipeline_mode<synchronous>, transform_indices = @transform_0, window_bounds = array<i64: 8, 8>}, {pipeline_mode = #tpu.pipeline_mode<synchronous>, transform_indices = @transform_1, window_bounds = array<i64: 16, 8>}, {pipeline_mode = #tpu.pipeline_mode<synchronous>, transform_indices = @transform_2, window_bounds = array<i64: 32, 16>}, {pipeline_mode = #tpu.pipeline_mode<synchronous>, transform_indices = @transform_3, window_bounds = array<i64: 32, 1>}, {pipeline_mode = #tpu.pipeline_mode<synchronous>, transform_indices = @transform_4, window_bounds = array<i64: 32, 32>}, {pipeline_mode = #tpu.pipeline_mode<synchronous>, transform_indices = @transform_5, window_bounds = array<i64: 32, 1>}, {pipeline_mode = #tpu.pipeline_mode<synchronous>, transform_indices = @transform_6, window_bounds = array<i64: 4, 32>}, {transform_indices = @transform_7, window_bounds = array<i64: 1, 256>}, {transform_indices = @transform_8, window_bounds = array<i64: 1, 256>}, {transform_indices = @transform_9, window_bounds = array<i64: 4, 256>}, {pipeline_mode = #tpu.pipeline_mode<synchronous>, transform_indices = @transform_10, window_bounds = array<i64: 2, 4>}, {pipeline_mode = #tpu.pipeline_mode<synchronous>, transform_indices = @transform_11, window_bounds = array<i64: 2, 1>}, {transform_indices = @transform_12, window_bounds = array<i64: 2, 256>}]} {
    %c0_i32 = arith.constant 0 : i32
    %0 = arith.cmpi eq, %arg0, %c0_i32 : i32
    %1 = arith.extui %0 : i1 to i32
    %c0_i32_0 = arith.constant 0 : i32
    %2 = arith.cmpi ne, %1, %c0_i32_0 : i32
    scf.if %2 {
      %c0_16 = arith.constant 0 : index
      %c0_17 = arith.constant 0 : index
      %28 = vector.load %arg1[%c0_16, %c0_17] : memref<8x8xf32, #tpu.memory_space<vmem>>, vector<8x8xf32>
      %c0_18 = arith.constant 0 : index
      %c0_19 = arith.constant 0 : index
      %29 = vector.load %arg2[%c0_18, %c0_19] : memref<16x8xf32, #tpu.memory_space<vmem>>, vector<16x8xf32>
      %cst_20 = arith.constant dense<0.000000e+00> : vector<16x8xf32>
      %30 = tpu.matmul %29, %28, %cst_20 {dimension_numbers = #tpu.dot_dimension_numbers<[1], [0], [0], [1], [0, 0, 1, 1], [], []>} : vector<16x8xf32>, vector<8x8xf32>, vector<16x8xf32> -> vector<16x8xf32>
      %c0_21 = arith.constant 0 : index
      %c0_22 = arith.constant 0 : index
      %31 = vector.load %arg3[%c0_21, %c0_22] : memref<32x16xf32, #tpu.memory_space<vmem>>, vector<32x16xf32>
      %cst_23 = arith.constant dense<0.000000e+00> : vector<32x8xf32>
      %32 = tpu.matmul %31, %30, %cst_23 {dimension_numbers = #tpu.dot_dimension_numbers<[1], [0], [0], [1], [0, 0, 1, 1], [], []>} : vector<32x16xf32>, vector<16x8xf32>, vector<32x8xf32> -> vector<32x8xf32>
      %c0_24 = arith.constant 0 : index
      %c0_25 = arith.constant 0 : index
      %33 = vector.load %arg4[%c0_24, %c0_25] : memref<32x1xf32, #tpu.memory_space<vmem>>, vector<32x1xf32>
      %34 = vector.broadcast %33 : vector<32x1xf32> to vector<32x8xf32>
      %35 = arith.addf %32, %34 : vector<32x8xf32>
      %cst_26 = arith.constant 0.000000e+00 : f32
      %36 = vector.broadcast %cst_26 : f32 to vector<32x8xf32>
      %37 = arith.maximumf %35, %36 : vector<32x8xf32>
      %c0_27 = arith.constant 0 : index
      %c0_28 = arith.constant 0 : index
      %38 = vector.load %arg5[%c0_27, %c0_28] : memref<32x32xf32, #tpu.memory_space<vmem>>, vector<32x32xf32>
      %cst_29 = arith.constant dense<0.000000e+00> : vector<32x8xf32>
      %39 = tpu.matmul %38, %37, %cst_29 {dimension_numbers = #tpu.dot_dimension_numbers<[1], [0], [0], [1], [0, 0, 1, 1], [], []>} : vector<32x32xf32>, vector<32x8xf32>, vector<32x8xf32> -> vector<32x8xf32>
      %cst_30 = arith.constant dense<0.000000e+00> : vector<32x8xf32>
      %40 = tpu.matmul %39, %28, %cst_30 {dimension_numbers = #tpu.dot_dimension_numbers<[1], [0], [0], [1], [0, 0, 1, 1], [], []>} : vector<32x8xf32>, vector<8x8xf32>, vector<32x8xf32> -> vector<32x8xf32>
      %c0_31 = arith.constant 0 : index
      %c0_32 = arith.constant 0 : index
      %41 = vector.load %arg6[%c0_31, %c0_32] : memref<32x1xf32, #tpu.memory_space<vmem>>, vector<32x1xf32>
      %42 = vector.broadcast %41 : vector<32x1xf32> to vector<32x8xf32>
      %43 = arith.addf %40, %42 : vector<32x8xf32>
      %cst_33 = arith.constant 0.000000e+00 : f32
      %44 = vector.broadcast %cst_33 : f32 to vector<32x8xf32>
      %45 = arith.maximumf %43, %44 : vector<32x8xf32>
      %c0_34 = arith.constant 0 : index
      %c0_35 = arith.constant 0 : index
      %46 = vector.load %arg7[%c0_34, %c0_35] : memref<4x32xf32, #tpu.memory_space<vmem>>, vector<4x32xf32>
      %cst_36 = arith.constant dense<0.000000e+00> : vector<4x8xf32>
      %47 = tpu.matmul %46, %45, %cst_36 {dimension_numbers = #tpu.dot_dimension_numbers<[1], [0], [0], [1], [0, 0, 1, 1], [], []>} : vector<4x32xf32>, vector<32x8xf32>, vector<4x8xf32> -> vector<4x8xf32>
      %c0_37 = arith.constant 0 : index
      %c0_38 = arith.constant 0 : index
      %48 = vector.load %arg14[%c0_37, %c0_38] : memref<4x8xf32, #tpu.memory_space<vmem>>, vector<4x8xf32>
      tpu.vector_store %arg14[%c0_37, %c0_38], %47 {strides = array<i32>} : memref<4x8xf32, #tpu.memory_space<vmem>>, vector<4x8xf32>,
    } else {
    }
    %3 = tpu.iota {dimensions = array<i32: 0>} : vector<8x256xi32>
    %c0 = arith.constant 0 : index
    %c0_1 = arith.constant 0 : index
    %4 = vector.load %arg8[%c0, %c0_1] : memref<1x256xi32, #tpu.memory_space<vmem>>, vector<1x256xi32>
    %5 = vector.broadcast %4 : vector<1x256xi32> to vector<8x256xi32>
    %6 = arith.cmpi eq, %3, %5 : vector<8x256xi32>
    %7 = arith.extui %6 : vector<8x256xi1> to vector<8x256xi32>
    %8 = arith.sitofp %7 : vector<8x256xi32> to vector<8x256xf32>
    %c0_2 = arith.constant 0 : index
    %c0_3 = arith.constant 0 : index
    %9 = vector.load %arg9[%c0_2, %c0_3] : memref<1x256xi32, #tpu.memory_space<vmem>>, vector<1x256xi32>
    %10 = vector.broadcast %9 : vector<1x256xi32> to vector<8x256xi32>
    %11 = arith.cmpi eq, %3, %10 : vector<8x256xi32>
    %12 = arith.extui %11 : vector<8x256xi1> to vector<8x256xi32>
    %13 = arith.sitofp %12 : vector<8x256xi32> to vector<8x256xf32>
    %c0_4 = arith.constant 0 : index
    %c0_5 = arith.constant 0 : index
    %14 = vector.load %arg14[%c0_4, %c0_5] : memref<4x8xf32, #tpu.memory_space<vmem>>, vector<4x8xf32>
    %15 = vector.extract_strided_slice %14 {offsets = [0, 0], sizes = [2, 8], strides = [1, 1]} : vector<4x8xf32> to vector<2x8xf32>
    %cst = arith.constant dense<0.000000e+00> : vector<2x256xf32>
    %16 = tpu.matmul %15, %8, %cst {dimension_numbers = #tpu.dot_dimension_numbers<[1], [0], [0], [1], [0, 0, 1, 1], [], []>} : vector<2x8xf32>, vector<8x256xf32>, vector<2x256xf32> -> vector<2x256xf32>
    %17 = vector.extract_strided_slice %14 {offsets = [2, 0], sizes = [2, 8], strides = [1, 1]} : vector<4x8xf32> to vector<2x8xf32>
    %cst_6 = arith.constant dense<0.000000e+00> : vector<2x256xf32>
    %18 = tpu.matmul %17, %13, %cst_6 {dimension_numbers = #tpu.dot_dimension_numbers<[1], [0], [0], [1], [0, 0, 1, 1], [], []>} : vector<2x8xf32>, vector<8x256xf32>, vector<2x256xf32> -> vector<2x256xf32>
    %19 = arith.addf %16, %18 : vector<2x256xf32>
    %c0_7 = arith.constant 0 : index
    %c0_8 = arith.constant 0 : index
    %20 = vector.load %arg11[%c0_7, %c0_8] : memref<2x4xf32, #tpu.memory_space<vmem>>, vector<2x4xf32>
    %c0_9 = arith.constant 0 : index
    %c0_10 = arith.constant 0 : index
    %21 = vector.load %arg10[%c0_9, %c0_10] : memref<4x256xf32, #tpu.memory_space<vmem>>, vector<4x256xf32>
    %cst_11 = arith.constant dense<0.000000e+00> : vector<2x256xf32>
    %22 = tpu.matmul %20, %21, %cst_11 {dimension_numbers = #tpu.dot_dimension_numbers<[1], [0], [0], [1], [0, 0, 1, 1], [], []>} : vector<2x4xf32>, vector<4x256xf32>, vector<2x256xf32> -> vector<2x256xf32>
    %23 = arith.addf %19, %22 : vector<2x256xf32>
    %c0_12 = arith.constant 0 : index
    %c0_13 = arith.constant 0 : index
    %24 = vector.load %arg12[%c0_12, %c0_13] : memref<2x1xf32, #tpu.memory_space<vmem>>, vector<2x1xf32>
    %25 = vector.broadcast %24 : vector<2x1xf32> to vector<2x256xf32>
    %26 = arith.addf %23, %25 : vector<2x256xf32>
    %c0_14 = arith.constant 0 : index
    %c0_15 = arith.constant 0 : index
    %27 = vector.load %arg13[%c0_14, %c0_15] : memref<2x256xf32, #tpu.memory_space<vmem>>, vector<2x256xf32>
    tpu.vector_store %arg13[%c0_14, %c0_15], %26 {strides = array<i32>} : memref<2x256xf32, #tpu.memory_space<vmem>>, vector<2x256xf32>,
    return
  }
  func.func @transform_0(%arg0: i32) -> (i32, i32) {
    %c0_i32 = arith.constant 0 : i32
    %c0_i32_0 = arith.constant 0 : i32
    %c0_i32_1 = arith.constant 0 : i32
    return %c0_i32, %c0_i32_0 : i32, i32
  }
  func.func @transform_1(%arg0: i32) -> (i32, i32) {
    %c0_i32 = arith.constant 0 : i32
    %c0_i32_0 = arith.constant 0 : i32
    %c0_i32_1 = arith.constant 0 : i32
    return %c0_i32, %c0_i32_0 : i32, i32
  }
  func.func @transform_2(%arg0: i32) -> (i32, i32) {
    %c0_i32 = arith.constant 0 : i32
    %c0_i32_0 = arith.constant 0 : i32
    %c0_i32_1 = arith.constant 0 : i32
    return %c0_i32, %c0_i32_0 : i32, i32
  }
  func.func @transform_3(%arg0: i32) -> (i32, i32) {
    %c0_i32 = arith.constant 0 : i32
    %c0_i32_0 = arith.constant 0 : i32
    %c0_i32_1 = arith.constant 0 : i32
    return %c0_i32, %c0_i32_0 : i32, i32
  }
  func.func @transform_4(%arg0: i32) -> (i32, i32) {
    %c0_i32 = arith.constant 0 : i32
    %c0_i32_0 = arith.constant 0 : i32
    %c0_i32_1 = arith.constant 0 : i32
    return %c0_i32, %c0_i32_0 : i32, i32
  }
  func.func @transform_5(%arg0: i32) -> (i32, i32) {
    %c0_i32 = arith.constant 0 : i32
    %c0_i32_0 = arith.constant 0 : i32
    %c0_i32_1 = arith.constant 0 : i32
    return %c0_i32, %c0_i32_0 : i32, i32
  }
  func.func @transform_6(%arg0: i32) -> (i32, i32) {
    %c0_i32 = arith.constant 0 : i32
    %c0_i32_0 = arith.constant 0 : i32
    %c0_i32_1 = arith.constant 0 : i32
    return %c0_i32, %c0_i32_0 : i32, i32
  }
  func.func @transform_7(%arg0: i32) -> (i32, i32) {
    %c0_i32 = arith.constant 0 : i32
    %c0_i32_0 = arith.constant 0 : i32
    return %c0_i32, %arg0 : i32, i32
  }
  func.func @transform_8(%arg0: i32) -> (i32, i32) {
    %c0_i32 = arith.constant 0 : i32
    %c0_i32_0 = arith.constant 0 : i32
    return %c0_i32, %arg0 : i32, i32
  }
  func.func @transform_9(%arg0: i32) -> (i32, i32) {
    %c0_i32 = arith.constant 0 : i32
    %c0_i32_0 = arith.constant 0 : i32
    return %c0_i32, %arg0 : i32, i32
  }
  func.func @transform_10(%arg0: i32) -> (i32, i32) {
    %c0_i32 = arith.constant 0 : i32
    %c0_i32_0 = arith.constant 0 : i32
    %c0_i32_1 = arith.constant 0 : i32
    return %c0_i32, %c0_i32_0 : i32, i32
  }
  func.func @transform_11(%arg0: i32) -> (i32, i32) {
    %c0_i32 = arith.constant 0 : i32
    %c0_i32_0 = arith.constant 0 : i32
    %c0_i32_1 = arith.constant 0 : i32
    return %c0_i32, %c0_i32_0 : i32, i32
  }
  func.func @transform_12(%arg0: i32) -> (i32, i32) {
    %c0_i32 = arith.constant 0 : i32
    %c0_i32_0 = arith.constant 0 : i32
    return %c0_i32, %arg0 : i32, i32
  }
}

</mosaic_0001>

<llo_original>
// kernel: edge_classifier_forward.1
$region0: #{edge_classifier_forward.1}
  #allocation0 [shape = 'u32[]', space=smem, size = 0x4, offset = 0x4, fixed_abs, tag = 'smem constant byte address 0x4 - core index']
  #allocation1 [shape = 'u32[72,128]{1,0:T(1,128)}', space=vmem, size = 0x9000, scoped, tag = 'internal scratch']
  #allocation2 [shape = 'f32[4,8]{1,0:T(4,128)}', space=vmem, size = 0x800, scoped, tag = 'scratch operand']
  %s0 = inlined_call_operand.vmem [shape: f32[8,8], index: 0, kind: input, shape index: {}]
  %s1 = inlined_call_operand.vmem [shape: f32[16,8], index: 1, kind: input, shape index: {}]
  %s2 = inlined_call_operand.vmem [shape: f32[32,16], index: 2, kind: input, shape index: {}]
  %s3 = inlined_call_operand.vmem [shape: f32[32,1], index: 3, kind: input, shape index: {}]
  %s4 = inlined_call_operand.vmem [shape: f32[32,32], index: 4, kind: input, shape index: {}]
  %s5 = inlined_call_operand.vmem [shape: f32[32,1], index: 5, kind: input, shape index: {}]
  %s6 = inlined_call_operand.vmem [shape: f32[4,32], index: 6, kind: input, shape index: {}]
  %s7 = inlined_call_operand.vmem [shape: s32[1,256], index: 7, kind: input, shape index: {}]
  %s8 = inlined_call_operand.vmem [shape: s32[1,256], index: 8, kind: input, shape index: {}]
  %s9 = inlined_call_operand.vmem [shape: f32[4,256], index: 9, kind: input, shape index: {}]
  %s10 = inlined_call_operand.vmem [shape: f32[2,4], index: 10, kind: input, shape index: {}]
  %s11 = inlined_call_operand.vmem [shape: f32[2,1], index: 11, kind: input, shape index: {}]
  %s12 = inlined_call_operand.vmem [shape: f32[2,256], index: 12, kind: output, shape index: {}]
  %s13 = sld [smem:[#allocation0]]
  $region62: #{edge_classifier_forward.1} parent=0
    _
  %s15 = ssub.s32 1, %s13
  %s16 = scalar_select 0, %s15, %s13
  // Predicated region
  $region2: #{edge_classifier_forward.1} parent=0 // pred_check
    _
  $region3: #{edge_classifier_forward.1} parent=0 // pred_check_branch
    %18 = sbr.rel (0) target = $region5
  $region4: #{edge_classifier_forward.1} parent=0 // pred_region
    _
  $region5: #{edge_classifier_forward.1} parent=0 // pred_fallthru
    _
  // Predicated region
  $region6: #{edge_classifier_forward.1} parent=0 // pred_check
    _
  $region7: #{edge_classifier_forward.1} parent=0 // pred_check_branch
    %20 = sbr.rel (0) target = $region9
  $region8: #{edge_classifier_forward.1} parent=0 // pred_region
    _
  $region9: #{edge_classifier_forward.1} parent=0 // pred_fallthru
    _
  // Predicated region
  $region10: #{edge_classifier_forward.1} parent=0 // pred_check
    _
  $region11: #{edge_classifier_forward.1} parent=0 // pred_check_branch
    %22 = sbr.rel (0) target = $region13
  $region12: #{edge_classifier_forward.1} parent=0 // pred_region
    _
  $region13: #{edge_classifier_forward.1} parent=0 // pred_fallthru
    _
  // Predicated region
  $region14: #{edge_classifier_forward.1} parent=0 // pred_check
    _
  $region15: #{edge_classifier_forward.1} parent=0 // pred_check_branch
    %24 = sbr.rel (0) target = $region17
  $region16: #{edge_classifier_forward.1} parent=0 // pred_region
    _
  $region17: #{edge_classifier_forward.1} parent=0 // pred_fallthru
    _
  // Predicated region
  $region18: #{edge_classifier_forward.1} parent=0 // pred_check
    _
  $region19: #{edge_classifier_forward.1} parent=0 // pred_check_branch
    %26 = sbr.rel (0) target = $region21
  $region20: #{edge_classifier_forward.1} parent=0 // pred_region
    _
  $region21: #{edge_classifier_forward.1} parent=0 // pred_fallthru
    _
  // Predicated region
  $region22: #{edge_classifier_forward.1} parent=0 // pred_check
    _
  $region23: #{edge_classifier_forward.1} parent=0 // pred_check_branch
    %28 = sbr.rel (0) target = $region25
  $region24: #{edge_classifier_forward.1} parent=0 // pred_region
    _
  $region25: #{edge_classifier_forward.1} parent=0 // pred_fallthru
    _
  // Predicated region
  $region26: #{edge_classifier_forward.1} parent=0 // pred_check
    _
  $region27: #{edge_classifier_forward.1} parent=0 // pred_check_branch
    %30 = sbr.rel (0) target = $region29
  $region28: #{edge_classifier_forward.1} parent=0 // pred_region
    _
  $region29: #{edge_classifier_forward.1} parent=0 // pred_fallthru
    _
  // Predicated region
  $region30: #{edge_classifier_forward.1} parent=0 // pred_check
    _
  $region31: #{edge_classifier_forward.1} parent=0 // pred_check_branch
    %32 = sbr.rel (0) target = $region33
  $region32: #{edge_classifier_forward.1} parent=0 // pred_region
    _
  $region33: #{edge_classifier_forward.1} parent=0 // pred_fallthru
    _
  // Predicated region
  $region34: #{edge_classifier_forward.1} parent=0 // pred_check
    _
  $region35: #{edge_classifier_forward.1} parent=0 // pred_check_branch
    %34 = sbr.rel (0) target = $region37
  $region36: #{edge_classifier_forward.1} parent=0 // pred_region
    _
  $region37: #{edge_classifier_forward.1} parent=0 // pred_fallthru
    _
  // Predicated region
  $region38: #{edge_classifier_forward.1} parent=0 // pred_check
    _
  $region39: #{edge_classifier_forward.1} parent=0 // pred_check_branch
    %36 = sbr.rel (0) target = $region41
  $region40: #{edge_classifier_forward.1} parent=0 // pred_region
    _
  $region41: #{edge_classifier_forward.1} parent=0 // pred_fallthru
    _
  // Predicated region
  $region42: #{edge_classifier_forward.1} parent=0 // pred_check
    _
  $region43: #{edge_classifier_forward.1} parent=0 // pred_check_branch
    %38 = sbr.rel (0) target = $region45
  $region44: #{edge_classifier_forward.1} parent=0 // pred_region
    _
  $region45: #{edge_classifier_forward.1} parent=0 // pred_fallthru
    _
  // Predicated region
  $region46: #{edge_classifier_forward.1} parent=0 // pred_check
    _
  $region47: #{edge_classifier_forward.1} parent=0 // pred_check_branch
    %40 = sbr.rel (0) target = $region49
  $region48: #{edge_classifier_forward.1} parent=0 // pred_region
    _
  $region49: #{edge_classifier_forward.1} parent=0 // pred_fallthru
    _
  %p41 = scmp.eq.s32.totalorder 0, 0
  // Predicated region
  $region50: #{edge_classifier_forward.1} parent=0 // pred_check
    %p42 = pneg %p41
  $region51: #{edge_classifier_forward.1} parent=0 // pred_check_branch
    %44 = sbr.rel (%p42) target = $region53
  $region52: #{edge_classifier_forward.1} parent=0 // pred_region
    %v45 = vld [vmem:[%s0] sm:$0xff]
    %v46 = vld [vmem:[%s1] sm:$0xff]
    %v47 = vld [vmem:[%s1 + $0x8] sm:$0xff]
    %vm48 = vcmask 64512
    %v50 = vsel %vm48, %v46, 0
    %v53 = vsel %vm48, %v47, 0
    %55 = vmatpush.msra.mxu0 0.0
    %56 = vmatpush.msra.mxu0 0.0
    %57 = vmatpush.msra.mxu0 0.0
    %58 = vmatpush.msra.mxu0 0.0
    %59 = vmatpush.msra.mxu0 0.0
    %60 = vmatpush.msra.mxu0 0.0
    %61 = vmatpush.msra.mxu0 0.0
    %62 = vmatpush.msra.mxu0 0.0
    %63 = vmatpush.msra.mxu0 0.0
    %64 = vmatpush.msra.mxu0 0.0
    %65 = vmatpush.msra.mxu0 0.0
    %66 = vmatpush.msra.mxu0 0.0
    %67 = vmatpush.msra.mxu0 0.0
    %68 = vmatpush.msra.mxu0 0.0
    %69 = vmatpush.msra.mxu0 0.0
    %70 = vmatpush.msra.mxu0 %v45
    %71 = vmatmul.f32.gmra.mxu0 %v50
    %v72 = vpop.f32.mrf.mxu0
    %v73 = vadd.f32 0.0, %v72
    %74 = vmatmul.f32.gmra.mxu0 %v53
    %v75 = vpop.f32.mrf.mxu0
    %v76 = vadd.f32 0.0, %v75
    %77 = vdwg.mxu0
    %v78 = vld [vmem:[%s2] sm:$0xff]
    %v79 = vld [vmem:[%s2 + $0x8] sm:$0xff]
    %v80 = vld [vmem:[%s2 + $0x10] sm:$0xff]
    %v81 = vld [vmem:[%s2 + $0x18] sm:$0xff]
    %v82 = vld [vmem:[%s3] sm:$0xff]
    %v83 = vld [vmem:[%s3 + $0x8] sm:$0xff]
    %v84 = vld [vmem:[%s3 + $0x10] sm:$0xff]
    %v85 = vld [vmem:[%s3 + $0x18] sm:$0xff]
    %87 = vset.pattern.permute.xlu0 0
    %88 = vperm.xlu0 %87, %v82
    %v89 = vpop.permute.xlu0 %88
    %92 = vset.pattern.permute.xlu0 0
    %93 = vperm.xlu0 %92, %v83
    %v94 = vpop.permute.xlu0 %93
    %97 = vset.pattern.permute.xlu0 0
    %98 = vperm.xlu0 %97, %v84
    %v99 = vpop.permute.xlu0 %98
    %102 = vset.pattern.permute.xlu0 0
    %103 = vperm.xlu0 %102, %v85
    %v104 = vpop.permute.xlu0 %103
    %vm106 = vcmask 130048
    %v108 = vsel %vm106, %v78, 0
    %v111 = vsel %vm106, %v79, 0
    %v114 = vsel %vm106, %v80, 0
    %v117 = vsel %vm106, %v81, 0
    %119 = vmatpush.msra.mxu0 0.0
    %120 = vmatpush.msra.mxu0 0.0
    %121 = vmatpush.msra.mxu0 0.0
    %122 = vmatpush.msra.mxu0 0.0
    %123 = vmatpush.msra.mxu0 0.0
    %124 = vmatpush.msra.mxu0 0.0
    %125 = vmatpush.msra.mxu0 0.0
    %126 = vmatpush.msra.mxu0 0.0
    %127 = vmatpush.msra.mxu0 0.0
    %128 = vmatpush.msra.mxu0 0.0
    %129 = vmatpush.msra.mxu0 0.0
    %130 = vmatpush.msra.mxu0 0.0
    %131 = vmatpush.msra.mxu0 0.0
    %132 = vmatpush.msra.mxu0 0.0
    %133 = vmatpush.msra.mxu0 %v76
    %134 = vmatpush.msra.mxu0 %v73
    %135 = vmatmul.f32.gmra.mxu0 %v108
    %v136 = vpop.f32.mrf.mxu0
    %v137 = vadd.f32 %v89, %v136
    %138 = vmatmul.f32.gmra.mxu0 %v111
    %v139 = vpop.f32.mrf.mxu0
    %v140 = vadd.f32 %v94, %v139
    %141 = vmatmul.f32.gmra.mxu0 %v114
    %v142 = vpop.f32.mrf.mxu0
    %v143 = vadd.f32 %v99, %v142
    %144 = vmatmul.f32.gmra.mxu0 %v117
    %v145 = vpop.f32.mrf.mxu0
    %v146 = vadd.f32 %v104, %v145
    %147 = vdwg.mxu0
    %v148 = vmax.f32 %v137, 0.0
    %v149 = vmax.f32 %v140, 0.0
    %v150 = vmax.f32 %v143, 0.0
    %v151 = vmax.f32 %v146, 0.0
    %v152 = vld [vmem:[%s4] sm:$0xff]
    %v153 = vld [vmem:[%s4 + $0x8] sm:$0xff]
    %v154 = vld [vmem:[%s4 + $0x10] sm:$0xff]
    %v155 = vld [vmem:[%s4 + $0x18] sm:$0xff]
    %vm156 = vcmask 261120
    %v158 = vsel %vm156, %v152, 0
    %v161 = vsel %vm156, %v153, 0
    %v164 = vsel %vm156, %v154, 0
    %v167 = vsel %vm156, %v155, 0
    %169 = vmatpush.msra.mxu0 0.0
    %170 = vmatpush.msra.mxu0 0.0
    %171 = vmatpush.msra.mxu0 0.0
    %172 = vmatpush.msra.mxu0 0.0
    %173 = vmatpush.msra.mxu0 0.0
    %174 = vmatpush.msra.mxu0 0.0
    %175 = vmatpush.msra.mxu0 0.0
    %176 = vmatpush.msra.mxu0 0.0
    %177 = vmatpush.msra.mxu0 0.0
    %178 = vmatpush.msra.mxu0 0.0
    %179 = vmatpush.msra.mxu0 0.0
    %180 = vmatpush.msra.mxu0 0.0
    %181 = vmatpush.msra.mxu0 %v151
    %182 = vmatpush.msra.mxu0 %v150
    %183 = vmatpush.msra.mxu0 %v149
    %184 = vmatpush.msra.mxu0 %v148
    %185 = vmatmul.f32.gmra.mxu0 %v158
    %v186 = vpop.f32.mrf.mxu0
    %v187 = vadd.f32 0.0, %v186
    %188 = vmatmul.f32.gmra.mxu0 %v161
    %v189 = vpop.f32.mrf.mxu0
    %v190 = vadd.f32 0.0, %v189
    %191 = vmatmul.f32.gmra.mxu0 %v164
    %v192 = vpop.f32.mrf.mxu0
    %v193 = vadd.f32 0.0, %v192
    %194 = vmatmul.f32.gmra.mxu0 %v167
    %v195 = vpop.f32.mrf.mxu0
    %v196 = vadd.f32 0.0, %v195
    %197 = vdwg.mxu0
    %v198 = vld [vmem:[%s5] sm:$0xff]
    %v199 = vld [vmem:[%s5 + $0x8] sm:$0xff]
    %v200 = vld [vmem:[%s5 + $0x10] sm:$0xff]
    %v201 = vld [vmem:[%s5 + $0x18] sm:$0xff]
    %203 = vset.pattern.permute.xlu0 0
    %204 = vperm.xlu0 %203, %v198
    %v205 = vpop.permute.xlu0 %204
    %208 = vset.pattern.permute.xlu0 0
    %209 = vperm.xlu0 %208, %v199
    %v210 = vpop.permute.xlu0 %209
    %213 = vset.pattern.permute.xlu0 0
    %214 = vperm.xlu0 %213, %v200
    %v215 = vpop.permute.xlu0 %214
    %218 = vset.pattern.permute.xlu0 0
    %219 = vperm.xlu0 %218, %v201
    %v220 = vpop.permute.xlu0 %219
    %v223 = vsel %vm48, %v187, 0
    %v226 = vsel %vm48, %v190, 0
    %v229 = vsel %vm48, %v193, 0
    %v232 = vsel %vm48, %v196, 0
    %234 = vmatpush.msra.mxu0 0.0
    %235 = vmatpush.msra.mxu0 0.0
    %236 = vmatpush.msra.mxu0 0.0
    %237 = vmatpush.msra.mxu0 0.0
    %238 = vmatpush.msra.mxu0 0.0
    %239 = vmatpush.msra.mxu0 0.0
    %240 = vmatpush.msra.mxu0 0.0
    %241 = vmatpush.msra.mxu0 0.0
    %242 = vmatpush.msra.mxu0 0.0
    %243 = vmatpush.msra.mxu0 0.0
    %244 = vmatpush.msra.mxu0 0.0
    %245 = vmatpush.msra.mxu0 0.0
    %246 = vmatpush.msra.mxu0 0.0
    %247 = vmatpush.msra.mxu0 0.0
    %248 = vmatpush.msra.mxu0 0.0
    %249 = vmatpush.msra.mxu0 %v45
    %250 = vmatmul.f32.gmra.mxu0 %v223
    %v251 = vpop.f32.mrf.mxu0
    %v252 = vadd.f32 %v205, %v251
    %253 = vmatmul.f32.gmra.mxu0 %v226
    %v254 = vpop.f32.mrf.mxu0
    %v255 = vadd.f32 %v210, %v254
    %256 = vmatmul.f32.gmra.mxu0 %v229
    %v257 = vpop.f32.mrf.mxu0
    %v258 = vadd.f32 %v215, %v257
    %259 = vmatmul.f32.gmra.mxu0 %v232
    %v260 = vpop.f32.mrf.mxu0
    %v261 = vadd.f32 %v220, %v260
    %262 = vdwg.mxu0
    %v263 = vmax.f32 %v252, 0.0
    %v264 = vmax.f32 %v255, 0.0
    %v265 = vmax.f32 %v258, 0.0
    %v266 = vmax.f32 %v261, 0.0
    %v267 = vld [vmem:[%s6] sm:$0xf]
    %v269 = vsel %vm156, %v267, 0
    %271 = vmatpush.msra.mxu0 0.0
    %272 = vmatpush.msra.mxu0 0.0
    %273 = vmatpush.msra.mxu0 0.0
    %274 = vmatpush.msra.mxu0 0.0
    %275 = vmatpush.msra.mxu0 0.0
    %276 = vmatpush.msra.mxu0 0.0
    %277 = vmatpush.msra.mxu0 0.0
    %278 = vmatpush.msra.mxu0 0.0
    %279 = vmatpush.msra.mxu0 0.0
    %280 = vmatpush.msra.mxu0 0.0
    %281 = vmatpush.msra.mxu0 0.0
    %282 = vmatpush.msra.mxu0 0.0
    %283 = vmatpush.msra.mxu0 %v266
    %284 = vmatpush.msra.mxu0 %v265
    %285 = vmatpush.msra.mxu0 %v264
    %286 = vmatpush.msra.mxu0 %v263
    %287 = vmatmul.f32.gmra.mxu0 %v269
    %v288 = vpop.f32.mrf.mxu0
    %v289 = vadd.f32 0.0, %v288
    %290 = vdwg.mxu0
    %vm291 = vcmask 60416
    %292 = vst.msk [vmem:[#allocation2] sm:$0xf] %vm291, %v289
  $region53: #{edge_classifier_forward.1} parent=0 // pred_fallthru
    _
  %v293 = vlaneseq
  %v294 = vshrl.u32 %v293, 7
  %v295 = vld [vmem:[%s7] sm:$0x3]
  %v296 = vperm.slane %v295, 0
  %v297 = vperm.slane %v295, 1
  %vm298 = vcmp.eq.s32.totalorder %v294, %v296
  %vm299 = vcmp.eq.s32.totalorder %v294, %v297
  %v300 = vsel %vm298, 1, 0
  %v301 = vsel %vm299, 1, 0
  %v302 = vcvt.s32.f32 %v300
  %v303 = vcvt.s32.f32 %v301
  %v304 = vld [vmem:[%s8] sm:$0x3]
  %v305 = vperm.slane %v304, 0
  %v306 = vperm.slane %v304, 1
  %vm307 = vcmp.eq.s32.totalorder %v294, %v305
  %vm308 = vcmp.eq.s32.totalorder %v294, %v306
  %v309 = vsel %vm307, 1, 0
  %v310 = vsel %vm308, 1, 0
  %v311 = vcvt.s32.f32 %v309
  %v312 = vcvt.s32.f32 %v310
  %v313 = vld [vmem:[#allocation2] sm:$0xf]
  %v315 = vrot.slane %v313, 2
  %vm316 = vcmask 64512
  %v317 = vsel %vm316, %v315, 0
  %319 = vmatpush.msra.mxu0 0.0
  %320 = vmatpush.msra.mxu0 0.0
  %321 = vmatpush.msra.mxu0 0.0
  %322 = vmatpush.msra.mxu0 0.0
  %323 = vmatpush.msra.mxu0 0.0
  %324 = vmatpush.msra.mxu0 0.0
  %325 = vmatpush.msra.mxu0 0.0
  %326 = vmatpush.msra.mxu0 0.0
  %327 = vmatpush.msra.mxu0 0.0
  %328 = vmatpush.msra.mxu0 0.0
  %329 = vmatpush.msra.mxu0 0.0
  %330 = vmatpush.msra.mxu0 0.0
  %331 = vmatpush.msra.mxu0 0.0
  %332 = vmatpush.msra.mxu0 0.0
  %333 = vmatpush.msra.mxu0 0.0
  %334 = vmatpush.msra.mxu0 %v311
  %335 = vmatmul.f32.gmra.mxu0 %v317
  %v336 = vpop.f32.mrf.mxu0
  %v337 = vadd.f32 0.0, %v336
  %338 = vdwg.mxu0
  %339 = vmatpush.msra.mxu0 0.0
  %340 = vmatpush.msra.mxu0 0.0
  %341 = vmatpush.msra.mxu0 0.0
  %342 = vmatpush.msra.mxu0 0.0
  %343 = vmatpush.msra.mxu0 0.0
  %344 = vmatpush.msra.mxu0 0.0
  %345 = vmatpush.msra.mxu0 0.0
  %346 = vmatpush.msra.mxu0 0.0
  %347 = vmatpush.msra.mxu0 0.0
  %348 = vmatpush.msra.mxu0 0.0
  %349 = vmatpush.msra.mxu0 0.0
  %350 = vmatpush.msra.mxu0 0.0
  %351 = vmatpush.msra.mxu0 0.0
  %352 = vmatpush.msra.mxu0 0.0
  %353 = vmatpush.msra.mxu0 0.0
  %354 = vmatpush.msra.mxu0 %v312
  %355 = vmatmul.f32.gmra.mxu0 %v317
  %v356 = vpop.f32.mrf.mxu0
  %v357 = vadd.f32 0.0, %v356
  %358 = vdwg.mxu0
  %v359 = vsel %vm316, %v313, 0
  %361 = vmatpush.msra.mxu0 0.0
  %362 = vmatpush.msra.mxu0 0.0
  %363 = vmatpush.msra.mxu0 0.0
  %364 = vmatpush.msra.mxu0 0.0
  %365 = vmatpush.msra.mxu0 0.0
  %366 = vmatpush.msra.mxu0 0.0
  %367 = vmatpush.msra.mxu0 0.0
  %368 = vmatpush.msra.mxu0 0.0
  %369 = vmatpush.msra.mxu0 0.0
  %370 = vmatpush.msra.mxu0 0.0
  %371 = vmatpush.msra.mxu0 0.0
  %372 = vmatpush.msra.mxu0 0.0
  %373 = vmatpush.msra.mxu0 0.0
  %374 = vmatpush.msra.mxu0 0.0
  %375 = vmatpush.msra.mxu0 0.0
  %376 = vmatpush.msra.mxu0 %v302
  %377 = vmatmul.f32.gmra.mxu0 %v359
  %v378 = vpop.f32.mrf.mxu0
  %v379 = vadd.f32 %v337, %v378
  %380 = vdwg.mxu0
  %381 = vmatpush.msra.mxu0 0.0
  %382 = vmatpush.msra.mxu0 0.0
  %383 = vmatpush.msra.mxu0 0.0
  %384 = vmatpush.msra.mxu0 0.0
  %385 = vmatpush.msra.mxu0 0.0
  %386 = vmatpush.msra.mxu0 0.0
  %387 = vmatpush.msra.mxu0 0.0
  %388 = vmatpush.msra.mxu0 0.0
  %389 = vmatpush.msra.mxu0 0.0
  %390 = vmatpush.msra.mxu0 0.0
  %391 = vmatpush.msra.mxu0 0.0
  %392 = vmatpush.msra.mxu0 0.0
  %393 = vmatpush.msra.mxu0 0.0
  %394 = vmatpush.msra.mxu0 0.0
  %395 = vmatpush.msra.mxu0 0.0
  %396 = vmatpush.msra.mxu0 %v303
  %397 = vmatmul.f32.gmra.mxu0 %v359
  %v398 = vpop.f32.mrf.mxu0
  %v399 = vadd.f32 %v357, %v398
  %400 = vdwg.mxu0
  %v401 = vld [vmem:[%s10] sm:$0x3]
  %v402 = vld [vmem:[%s9] sm:$0xff]
  %404 = vst [vmem:[#allocation1] ss:$2 sm:$0xff] %v402
  %v405 = vld.sshfl [vmem:[#allocation1] sm:$0xff pattern:$0x75316420]
  %v406 = vld.sshfl [vmem:[#allocation1 + $0x8] sm:$0xff pattern:$0x75316420]
  %vm407 = vcmask 31744
  %v409 = vsel %vm407, %v401, 0
  %vm411 = vcmask 1043456
  %v412 = vsel %vm411, %v405, 0
  %v414 = vsel %vm411, %v406, 0
  %416 = vmatpush.msra.mxu0 0.0
  %417 = vmatpush.msra.mxu0 0.0
  %418 = vmatpush.msra.mxu0 0.0
  %419 = vmatpush.msra.mxu0 0.0
  %420 = vmatpush.msra.mxu0 0.0
  %421 = vmatpush.msra.mxu0 0.0
  %422 = vmatpush.msra.mxu0 0.0
  %423 = vmatpush.msra.mxu0 0.0
  %424 = vmatpush.msra.mxu0 0.0
  %425 = vmatpush.msra.mxu0 0.0
  %426 = vmatpush.msra.mxu0 0.0
  %427 = vmatpush.msra.mxu0 0.0
  %428 = vmatpush.msra.mxu0 0.0
  %429 = vmatpush.msra.mxu0 0.0
  %430 = vmatpush.msra.mxu0 0.0
  %431 = vmatpush.msra.mxu0 %v412
  %432 = vmatmul.f32.gmra.mxu0 %v409
  %v433 = vpop.f32.mrf.mxu0
  %v434 = vadd.f32 0.0, %v433
  %435 = vdwg.mxu0
  %436 = vmatpush.msra.mxu0 0.0
  %437 = vmatpush.msra.mxu0 0.0
  %438 = vmatpush.msra.mxu0 0.0
  %439 = vmatpush.msra.mxu0 0.0
  %440 = vmatpush.msra.mxu0 0.0
  %441 = vmatpush.msra.mxu0 0.0
  %442 = vmatpush.msra.mxu0 0.0
  %443 = vmatpush.msra.mxu0 0.0
  %444 = vmatpush.msra.mxu0 0.0
  %445 = vmatpush.msra.mxu0 0.0
  %446 = vmatpush.msra.mxu0 0.0
  %447 = vmatpush.msra.mxu0 0.0
  %448 = vmatpush.msra.mxu0 0.0
  %449 = vmatpush.msra.mxu0 0.0
  %450 = vmatpush.msra.mxu0 0.0
  %451 = vmatpush.msra.mxu0 %v414
  %452 = vmatmul.f32.gmra.mxu0 %v409
  %v453 = vpop.f32.mrf.mxu0
  %v454 = vadd.f32 0.0, %v453
  %455 = vdwg.mxu0
  %v456 = vadd.f32 %v379, %v434
  %v457 = vadd.f32 %v399, %v454
  %v458 = vld [vmem:[%s11] sm:$0x3]
  %460 = vset.pattern.permute.xlu0 0
  %461 = vperm.xlu0 %460, %v458
  %v462 = vpop.permute.xlu0 %461
  %v464 = vadd.f32 %v456, %v462
  %v465 = vadd.f32 %v457, %v462
  %v468 = vrot.slane %v465, 6
  %vm469 = vcmask 1041408
  %v470 = vsel %vm469, %v464, %v468
  %472 = vst [vmem:[%s12] sm:$0xf] %v470
  // Predicated region
  $region54: #{edge_classifier_forward.1} parent=0 // pred_check
    _
  $region55: #{edge_classifier_forward.1} parent=0 // pred_check_branch
    %474 = sbr.rel (0) target = $region57
  $region56: #{edge_classifier_forward.1} parent=0 // pred_region
    _
  $region57: #{edge_classifier_forward.1} parent=0 // pred_fallthru
    _
  // Predicated region
  $region58: #{edge_classifier_forward.1} parent=0 // pred_check
    _
  $region59: #{edge_classifier_forward.1} parent=0 // pred_check_branch
    %476 = sbr.rel (0) target = $region61
  $region60: #{edge_classifier_forward.1} parent=0 // pred_region
    _
  $region61: #{edge_classifier_forward.1} parent=0 // pred_fallthru
    _

</llo_original>
